<compile_context>
chip_gen: v7x
topology: tpu7x:2x2x1
jax: 0.10.0
libtpu: 0.0.40
codegen_flags: <defaults>
</compile_context>

<pallas_src>
import math

import jax
import jax.numpy as jnp
from jax.experimental import pallas as pl
from jax.experimental.pallas import tpu as pltpu


# ---------------------------------------------------------------------------
# Kernels: pure streaming adds (HBM-bandwidth-bound; no EUP/XLU/MXU work).
# ---------------------------------------------------------------------------
def _add_rowbcast_kernel(x_ref, pe_ref, o_ref):
    # x_ref:  (TB, TL)  tile of the flattened (B, L*D) input (input dtype)
    # pe_ref: (1,  TL)  matching lane-slice of the folded (1, L*D) table (f32)
    # o_ref:  (TB, TL)
    o_ref[...] = (x_ref[...].astype(jnp.float32) + pe_ref[...]).astype(o_ref.dtype)


def _add_batchblock_kernel(x_ref, pe_ref, o_ref):
    # Fallback path: x_ref (TBc, L, D), pe_ref (L, D) f32 -> broadcast add.
    o_ref[...] = (x_ref[...].astype(jnp.float32) + pe_ref[...]).astype(o_ref.dtype)


# ---------------------------------------------------------------------------
# Hardware / tiling helpers
# ---------------------------------------------------------------------------
def _tpu_budget():
    """(vmem_capacity_bytes, tensorcores_per_chip) with conservative fallbacks."""
    vmem_cap = 64 * 1024 * 1024          # conservative default: v7x
    n_cores = 1
    try:
        info = pltpu.get_tpu_info()
        for name in ("vmem_capacity_bytes", "vmem_bytes", "vmem_size_bytes"):
            v = getattr(info, name, None)
            if v:
                vmem_cap = int(v)
                break
        for name in ("num_cores", "num_tensorcores", "tensorcores_per_chip",
                     "cores_per_chip"):
            v = getattr(info, name, None)
            if v:
                n_cores = int(v)
                break
    except Exception:
        pass
    return vmem_cap, n_cores


def _round_down(v, m):
    return (v // m) * m


def _pick_tiles(B, LD, itemsize, target_bytes, min_steps):
    """Row/lane tiles for the flattened (B, LD) layout.

    TB is a multiple of 8 (or the full B); TL is a multiple of 128 (or the
    full LD). Edge blocks are handled by pl.cdiv grid padding.
    """
    bytes_per_row = LD * itemsize
    rows_fit = target_bytes // bytes_per_row
    if rows_fit >= B:
        TB, TL = B, LD
    elif rows_fit >= 8:
        TB, TL = _round_down(rows_fit, 8), LD
    else:
        # Rows are fat -> shrink the row tile and tile the lane axis instead.
        TB = B if B < 8 else 8
        lanes_fit = max(128, target_bytes // (TB * itemsize))
        TL = min(LD, _round_down(lanes_fit, 128))
    n_row, n_lane = pl.cdiv(B, TB), pl.cdiv(LD, TL)

    # Force >= min_steps grid steps (requested only on multi-TC parts and
    # only when each half is big enough to be worth ~0.35us/step).
    if n_row * n_lane < min_steps:
        if B >= 16:
            TB = max(8, _round_down(-(-B // 2), 8))
            n_row = pl.cdiv(B, TB)
        elif LD >= 256:
            TL = (-(-(LD // 128) // 2)) * 128
            n_lane = pl.cdiv(LD, TL)
    return TB, TL, n_row, n_lane


# ---------------------------------------------------------------------------
# Wrapper
# ---------------------------------------------------------------------------
def _folded_table(t, pe_table, div_term, L, D):
    """pe_total[l, d] = pe_table[l, d] + pe_t[d], folded once in f32."""
    t = jnp.asarray(t, jnp.float32)
    pe_t = jnp.zeros((D,), jnp.float32)
    pe_t = pe_t.at[0::2].set(jnp.sin(t * div_term))
    pe_t = pe_t.at[1::2].set(jnp.cos(t * div_term))
    return pe_table[:L].astype(jnp.float32) + pe_t[None, :]


def positional_encoding_forward(x, t, pe_table, div_term, *,
                                target_block_bytes=None, min_grid_steps=None):
    """out[b, l, d] = x[b, l, d] + pe_table[l, d] + pe_t(t)[d]."""
    B, L, D = x.shape
    itemsize = jnp.dtype(x.dtype).itemsize

    vmem_cap, n_cores = _tpu_budget()
    if target_block_bytes is None:
        # ~8 MiB blocks on v7x (64 MiB VMEM), ~16 MiB on v5e/v6e (128 MiB).
        target_block_bytes = max(1 << 20, min(16 << 20, vmem_cap // 8))

    # Fold the row-broadcast time encoding into the table once (f32).
    # TODO(synk): for very small batches this extra O(L*D) HBM pass is a
    # noticeable fraction of total traffic; it could be moved in-kernel when
    # D % 128 == 0 (natural layout already lane-dense, so no fold is needed).
    pe_total = _folded_table(t, pe_table, div_term, L, D)            # (L, D) f32

    LD = L * D
    total_bytes = B * LD * itemsize
    if min_grid_steps is None:
        min_grid_steps = 2 if (n_cores >= 2 and total_bytes >= (2 << 20)) else 1

    if LD % 128 == 0:
        # --- main path: lane-dense flattened layout -------------------------
        x2 = x.reshape(B, LD)
        pe2 = pe_total.reshape(1, LD)
        TB, TL, n_row, n_lane = _pick_tiles(B, LD, itemsize,
                                            target_block_bytes, min_grid_steps)

        blk_in = TB * TL * itemsize
        blk_pe = TL * 4
        blk_f32 = TB * TL * 4                     # in-kernel f32 temporary
        vmem_limit = int(min(vmem_cap,
                             max(16 << 20,
                                 4 * blk_in + 2 * blk_pe + blk_f32 + (4 << 20))))

        # Grid: lane axis outer, row axis inner -> pe's block index is
        # constant along the inner axis, so it is fetched n_lane times
        # (once when n_lane == 1) instead of n_row * n_lane times.
        out2 = pl.pallas_call(
            _add_rowbcast_kernel,
            out_shape=jax.ShapeDtypeStruct((B, LD), x.dtype),
            grid=(n_lane, n_row),
            in_specs=[
                pl.BlockSpec((TB, TL), lambda j, i: (i, j)),   # x
                pl.BlockSpec((1, TL), lambda j, i: (0, j)),    # folded pe (f32)
            ],
            out_specs=pl.BlockSpec((TB, TL), lambda j, i: (i, j)),
            compiler_params=pltpu.CompilerParams(
                dimension_semantics=("parallel", "parallel"),
                vmem_limit_bytes=vmem_limit,
            ),
        )(x2, pe2)
        return out2.reshape(B, L, D)

    # --- fallback path (L*D not 128-aligned) --------------------------------
    # Stream multi-MiB blocks of whole (L, D) slabs (a chunk of batch elems
    # per grid step); pe's block index is constant so it is fetched once.
    # TODO(synk): when D is small, padding D up to a multiple of 128 in the
    # wrapper would turn masked partial-lane stores into full-lane stores.
    slab_bytes = LD * itemsize
    TBc = max(1, min(B, target_block_bytes // max(slab_bytes, 1)))
    n_b = pl.cdiv(B, TBc)

    blk_in = TBc * slab_bytes
    blk_pe = LD * 4
    vmem_limit = int(min(vmem_cap,
                         max(16 << 20,
                             4 * blk_in + 2 * blk_pe + TBc * LD * 4 + (4 << 20))))

    return pl.pallas_call(
        _add_batchblock_kernel,
        out_shape=jax.ShapeDtypeStruct((B, L, D), x.dtype),
        grid=(n_b,),
        in_specs=[
            pl.BlockSpec((TBc, L, D), lambda b: (b, 0, 0)),   # x
            pl.BlockSpec((L, D), lambda b: (0, 0)),           # folded pe (f32)
        ],
        out_specs=pl.BlockSpec((TBc, L, D), lambda b: (b, 0, 0)),
        compiler_params=pltpu.CompilerParams(
            dimension_semantics=("parallel",),
            vmem_limit_bytes=vmem_limit,
        ),
    )(x, pe_total)


# ---------------------------------------------------------------------------
# Deterministic __init__ equivalents + pure-JAX reference
# ---------------------------------------------------------------------------
def make_params(d_model, seq_len):
    position = jnp.arange(seq_len, dtype=jnp.float32)[:, None]                 # (L, 1)
    div_term = jnp.exp(
        jnp.arange(0, d_model, 2, dtype=jnp.float32) * (-math.log(10000.0) / d_model)
    )                                                                          # (D/2,)
    pe = jnp.zeros((seq_len, d_model), jnp.float32)
    pe = pe.at[:, 0::2].set(jnp.sin(position * div_term))
    pe = pe.at[:, 1::2].set(jnp.cos(position * div_term))
    return pe, div_term


def reference_forward(x, t, pe_table, div_term):
    """Pure-JAX mirror of the PyTorch forward (t scalar, L == seq_len)."""
    B, L, D = x.shape
    t = jnp.asarray(t, jnp.float32)
    pe_t = jnp.zeros((D,), jnp.float32)
    pe_t = pe_t.at[0::2].set(jnp.sin(t * div_term))
    pe_t = pe_t.at[1::2].set(jnp.cos(t * div_term))
    return (x.astype(jnp.float32) + pe_table[:L] + pe_t[None, None, :]).astype(x.dtype)


if __name__ == "__main__":
    key = jax.random.PRNGKey(0)

    def check(B, seq_len, d_model, t_scalar, **kw):
        pe_table, div_term = make_params(d_model, seq_len)
        xk = jax.random.fold_in(key, B * 131 + seq_len * 7 + d_model)
        x = jax.random.normal(xk, (B, seq_len, d_model), dtype=jnp.float32)
        out = positional_encoding_forward(x, t_scalar, pe_table, div_term, **kw)
        out = jax.block_until_ready(out)
        ref = reference_forward(x, t_scalar, pe_table, div_term)
        assert out.shape == x.shape
        assert jnp.allclose(out, ref, atol=1e-5, rtol=1e-5), (
            f"mismatch for shape {(B, seq_len, d_model)}")

    # Main lane-dense path (L*D multiple of 128), single block.
    check(2, 8, 32, 0.7)
    # Main path with forced >=2 grid steps (lane-split branch, 2-TC rule).
    check(2, 8, 32, 0.7, min_grid_steps=2)
    # Fallback path (L*D not 128-aligned).
    check(3, 8, 36, 1.3)
    # Edge-padded lane tiling (forced tiny block budget).
    check(4, 64, 96, 0.25, target_block_bytes=64 * 1024)
    # Edge-padded row tiling (B not a multiple of the row tile).
    check(20, 8, 128, 2.0, target_block_bytes=32 * 1024)
    # Row-split branch of the >=2-grid-steps rule.
    check(16, 8, 128, -0.5, min_grid_steps=2)

    print("KERNEL_OK")
</pallas_src>

<mosaic_0001>
module attributes {stable_mosaic.version = 11 : i64} {
  func.func @_add_rowbcast_kernel(%arg0: i32, %arg1: i32, %arg2: memref<2x256xf32, #tpu.memory_space<vmem>>, %arg3: memref<1x256xf32, #tpu.memory_space<vmem>>, %arg4: memref<2x256xf32, #tpu.memory_space<vmem>>) attributes {dimension_semantics = [#tpu.dimension_semantics<parallel>, #tpu.dimension_semantics<parallel>], iteration_bounds = array<i64: 1, 1>, scalar_prefetch = 0 : i64, scratch_operands = 0 : i64, tpu.core_type = #tpu.core_type<tc>, window_params = [{transform_indices = @transform_0, window_bounds = array<i64: 2, 256>}, {transform_indices = @transform_1, window_bounds = array<i64: 1, 256>}, {transform_indices = @transform_2, window_bounds = array<i64: 2, 256>}]} {
    %c0 = arith.constant 0 : index
    %c0_0 = arith.constant 0 : index
    %0 = vector.load %arg2[%c0, %c0_0] : memref<2x256xf32, #tpu.memory_space<vmem>>, vector<2x256xf32>
    %c0_1 = arith.constant 0 : index
    %c0_2 = arith.constant 0 : index
    %1 = vector.load %arg3[%c0_1, %c0_2] : memref<1x256xf32, #tpu.memory_space<vmem>>, vector<1x256xf32>
    %2 = vector.broadcast %1 : vector<1x256xf32> to vector<2x256xf32>
    %3 = arith.addf %0, %2 : vector<2x256xf32>
    %c0_3 = arith.constant 0 : index
    %c0_4 = arith.constant 0 : index
    %4 = vector.load %arg4[%c0_3, %c0_4] : memref<2x256xf32, #tpu.memory_space<vmem>>, vector<2x256xf32>
    tpu.vector_store %arg4[%c0_3, %c0_4], %3 {strides = array<i32>} : memref<2x256xf32, #tpu.memory_space<vmem>>, vector<2x256xf32>,
    return
  }
  func.func @transform_0(%arg0: i32, %arg1: i32) -> (i32, i32) {
    %c0_i32 = arith.constant 0 : i32
    return %arg1, %arg0 : i32, i32
  }
  func.func @transform_1(%arg0: i32, %arg1: i32) -> (i32, i32) {
    %c0_i32 = arith.constant 0 : i32
    %c0_i32_0 = arith.constant 0 : i32
    return %c0_i32, %arg0 : i32, i32
  }
  func.func @transform_2(%arg0: i32, %arg1: i32) -> (i32, i32) {
    %c0_i32 = arith.constant 0 : i32
    return %arg1, %arg0 : i32, i32
  }
}

</mosaic_0001>

<llo_original>
// kernel: tpu_custom_call.1
$region0: #{tpu_custom_call.1}
  #allocation0 [shape = 'u32[]', space=smem, size = 0x4, offset = 0x4, fixed_abs, tag = 'smem constant byte address 0x4 - core index']
  #allocation1 [shape = 'u32[144,128]{1,0:T(1,128)}', space=vmem, size = 0x12000, scoped, tag = 'internal scratch']
  %s0 = inlined_call_operand.hbm [shape: f32[2,256], index: 0, kind: input, shape index: {}]
  %s1 = inlined_call_operand.vmem [shape: f32[1,256], index: 1, kind: input, shape index: {}]
  %s2 = inlined_call_operand.hbm [shape: f32[2,256], index: 2, kind: output, shape index: {}]
  %s3 = sld [smem:[#allocation0]]
  $region22: #{tpu_custom_call.1} parent=0
    _
  %s5 = ssub.s32 1, %s3
  %s6 = scalar_select 0, %s5, %s3
  $region1: #{tpu_custom_call.1} parent=0
    #allocation2 [shape = 'u8[2048]{0}', space=vmem, size = 0x800, scoped, tag = 'input window, operand 0, single buffered']
    #allocation3 [shape = 's32[1]{0}', space=sflag, size = 0x4, scoped, tag = 'scoped memory for tpu_custom_call.1']
    #allocation4 [shape = 's32[1]{0}', space=sflag, size = 0x4, scoped, tag = 'scoped memory for tpu_custom_call.1']
    #allocation5 [shape = 'u8[2048]{0}', space=vmem, size = 0x800, scoped, tag = 'output window, operand 0, single buffered']
    %7 = vsyncpa [#allocation3], 0
    %8 = vsyncpa [#allocation4], 0
    // Predicated region
    $region2: #{tpu_custom_call.1} parent=1 // pred_check
      _
    $region3: #{tpu_custom_call.1} parent=1 // pred_check_branch
      %10 = sbr.rel (0) target = $region5
    $region4: #{tpu_custom_call.1} parent=1 // pred_region
      %s12 = ssub.s32 64, 64
      %13 = vsyncadd [#allocation3], %s12
      %s15 = sshll.u32 [#allocation2], 4
      %s16 = int_to_ptr.vmem [resolvable:$true] %s15
      %18 = dma.hbm_to_vmem [thread:$0]  %s0, 64, %s16, [#allocation3]
    $region5: #{tpu_custom_call.1} parent=1 // pred_fallthru
      _
    // Predicated region
    $region6: #{tpu_custom_call.1} parent=1 // pred_check
      _
    $region7: #{tpu_custom_call.1} parent=1 // pred_check_branch
      %20 = sbr.rel (0) target = $region9
    $region8: #{tpu_custom_call.1} parent=1 // pred_region
      _
    $region9: #{tpu_custom_call.1} parent=1 // pred_fallthru
      _
    // Predicated region
    $region10: #{tpu_custom_call.1} parent=1 // pred_check
      _
    $region11: #{tpu_custom_call.1} parent=1 // pred_check_branch
      %22 = sbr.rel (0) target = $region13
    $region12: #{tpu_custom_call.1} parent=1 // pred_region
      %23 = dma.done [#allocation3], 64
    $region13: #{tpu_custom_call.1} parent=1 // pred_fallthru
      _
    %v24 = vld [vmem:[#allocation2] sm:$0xf]
    %v25 = vld [vmem:[%s1] sm:$0x3]
    %v27 = vlaneseq
    %v28 = vshrl.u32 %v27, 7
    %v29 = vsub.s32 0, %v28
    %v30 = vrot.slane %v25, %v29
    %v31 = vlaneseq
    %v32 = vshrl.u32 %v31, 7
    %v33 = vsub.s32 1, %v32
    %v34 = vrot.slane %v25, %v33
    %v35 = vcombine.low %v30, %v34
    %v37 = vunpack.c.l.s4 1983009808
    %v38 = vunpack.c.0.s8 %v37
    %v39 = vlaneseq
    %v40 = vshrl.u32 %v39, 7
    %v41 = vsub.s32 %v38, %v40
    %v42 = vrot.slane %v35, %v41
    %v44 = vadd.f32 %v24, %v42
    %45 = vst [vmem:[#allocation5] sm:$0xf] %v44
    // Predicated region
    $region14: #{tpu_custom_call.1} parent=1 // pred_check
      _
    $region15: #{tpu_custom_call.1} parent=1 // pred_check_branch
      %47 = sbr.rel (0) target = $region17
    $region16: #{tpu_custom_call.1} parent=1 // pred_region
      %s49 = ssub.s32 64, 64
      %50 = vsyncadd [#allocation4], %s49
      %s52 = sshll.u32 [#allocation5], 4
      %s53 = int_to_ptr.vmem [resolvable:$true] %s52
      %55 = dma.vmem_to_hbm [thread:$0]  %s53, 64, %s2, [#allocation4]
    $region17: #{tpu_custom_call.1} parent=1 // pred_fallthru
      _
    // Predicated region
    $region18: #{tpu_custom_call.1} parent=1 // pred_check
      _
    $region19: #{tpu_custom_call.1} parent=1 // pred_check_branch
      %57 = sbr.rel (0) target = $region21
    $region20: #{tpu_custom_call.1} parent=1 // pred_region
      %58 = dma.done [#allocation4], 64
    $region21: #{tpu_custom_call.1} parent=1 // pred_fallthru
      _
    %59 = vsyncpa [#allocation3], 1
    %60 = vsyncpa [#allocation4], 1

</llo_original>
